<compile_context>
chip_gen: v6e
topology: v6e:2x2x1
jax: 0.10.0
libtpu: 0.0.40
codegen_flags: <defaults>
</compile_context>

<pallas_src>
import functools

import jax
import jax.numpy as jnp
import numpy as np
from jax.experimental import pallas as pl
from jax.experimental.pallas import tpu as pltpu


def _causal_conv1d_kernel(x_ref, w_ref, b_ref, o_ref, *scratch,
                          K: int, use_im2col: bool, has_carry: bool):
    """One (batch, C_out-tile, L-tile) grid step.

    x_ref : (C_in, Lt)                  current L tile (batch dim squeezed)
    w_ref : (co_t, K*C_in)  if use_im2col else (K, co_t, C_in)
    b_ref : (co_t, 1)
    o_ref : (co_t, Lt)
    scratch (optional, in order): halo_ref (C_in, K-1) carry, im_ref (K*C_in, Lt).
    """
    xc = x_ref[...]                       # x tile loaded exactly once
    c_in, lt = xc.shape

    halo_ref = None
    im_ref = None
    idx = 0
    if K > 1 and has_carry:
        halo_ref = scratch[idx]; idx += 1
    if K > 1 and use_im2col:
        im_ref = scratch[idx]; idx += 1

    if K > 1:
        if has_carry:
            # Causal halo carried across the sequential L sweep in VMEM scratch —
            # no extra HBM operand / DMA at all.
            @pl.when(pl.program_id(2) == 0)
            def _():
                halo_ref[...] = jnp.zeros_like(halo_ref)
            halo = halo_ref[...]          # (C_in, K-1): previous tile's tail
        else:
            halo = jnp.zeros((c_in, K - 1), dtype=xc.dtype)   # single-tile L

    if K == 1:
        acc = jnp.dot(w_ref[0], xc, preferred_element_type=jnp.float32)
    elif use_im2col:
        # Small C_in: fold the K taps into ONE MXU matmul (contraction K*C_in).
        # The (K*C_in, Lt) im2col tile is built tap-by-tap straight into a VMEM
        # scratch: one lane-aligned full-width store per tap (cuts in-VMEM copy
        # traffic and vreg pressure vs. the old value-side concat chain).
        for k in range(K):
            nh = K - 1 - k                # halo columns feeding tap k
            if nh > 0:
                tap = jnp.concatenate([halo[:, k:], xc[:, :lt - nh]], axis=-1)
            else:
                tap = xc
            im_ref[pl.ds(k * c_in, c_in), :] = tap
        acc = jnp.dot(w_ref[...], im_ref[...], preferred_element_type=jnp.float32)
    else:
        # Large C_in: contraction C_in already fills the MXU, so skip im2col —
        # K accumulating matmuls, no (K*C_in, Lt) intermediate in VMEM.
        acc = None
        for k in range(K):
            nh = K - 1 - k
            rhs = xc if nh == 0 else jnp.concatenate(
                [halo[:, k:], xc[:, :lt - nh]], axis=-1)
            part = jnp.dot(w_ref[k], rhs, preferred_element_type=jnp.float32)
            acc = part if acc is None else acc + part

    if K > 1 and has_carry:
        # Carry this tile's last K-1 columns to the next L step.
        halo_ref[...] = xc[:, lt - (K - 1):]

    o_ref[...] = (acc + b_ref[...].astype(jnp.float32)).astype(o_ref.dtype)


def _working_set_bytes(c_in, co_t, K, lt, xi, wi, oi, use_im2col, carry):
    ws = 2 * c_in * lt * xi               # x tile (double buffered)
    ws += 2 * co_t * lt * oi              # out tile (double buffered)
    ws += 2 * co_t * K * c_in * wi        # weight tile (double buffered)
    # TODO(synk): pipeline_mode=pl.Buffered(1) on the weight/bias specs would halve
    # the weight term (they are revisited, not streamed); left off for lowering safety.
    ws += 2 * co_t * 4                    # bias tile
    ws += co_t * lt * 4                   # f32 accumulator temporaries
    ws += c_in * lt * xi                  # one shifted-tap temporary
    if use_im2col:
        ws += K * c_in * lt * xi          # im2col scratch
    if carry:
        ws += c_in * 128 * xi             # halo scratch (lane padded)
    return ws


def causal_conv1d(x, weight, bias, *, dilation: int = 1, l_tile: int = 512,
                  co_tile=None, compute_dtype=None, cin_kdot_threshold: int = 256,
                  vmem_target_bytes: int = 20 << 20):
    """Causal 1D convolution (stride=1, padding=0, groups=1, 'zeros' padding-mode)."""
    N, C_in, L = x.shape
    C_out, C_in_w, K = weight.shape
    assert C_in_w == C_in
    # TODO(synk): dilation > 1 would need a (K-1)*dilation halo and strided taps.
    assert dilation == 1, "kernel assumes dilation=1 (module default)"
    assert l_tile % 128 == 0 and l_tile > 0

    out_dtype = x.dtype
    if compute_dtype is not None:         # e.g. bf16 on v6e/v7x: halves HBM bytes
        x = x.astype(compute_dtype)
        weight = weight.astype(compute_dtype)

    # Lane-dense L: pad to a multiple of 128 so output stores are unmasked vst
    # (biggest measured store lever); result is sliced back to L afterwards.
    Lp = ((L + 127) // 128) * 128
    if Lp != L:
        x = jnp.pad(x, ((0, 0), (0, 0), (0, Lp - L)))

    use_im2col = (K > 1) and (C_in < cin_kdot_threshold)

    # Lane-dense weight layouts (no (C_in, K)-minor tiling blow-up).
    if use_im2col:
        w_l = jnp.transpose(weight, (0, 2, 1)).reshape(C_out, K * C_in)
    else:
        w_l = jnp.transpose(weight, (2, 0, 1))          # (K, C_out, C_in)
    b_l = bias.reshape(C_out, 1)

    xi = x.dtype.itemsize
    wi = w_l.dtype.itemsize
    oi = jnp.dtype(out_dtype).itemsize

    # --- tiling: prefer n_co == 1 (x streamed from HBM exactly once), then fit the
    # VMEM working set by shrinking Lt, then co_t.  Budget is v5e/v7x-safe. --------
    if co_tile is None:
        co_t = C_out if 2 * C_out * K * C_in * wi <= (8 << 20) else min(C_out, 256)
    else:
        co_t = min(co_tile, C_out)
    if co_t != C_out:
        co_t = max(8, (co_t // 8) * 8)

    Lt = min(Lp, l_tile)
    while True:
        ws = _working_set_bytes(C_in, co_t, K, Lt, xi, wi, oi, use_im2col, K > 1)
        if ws <= vmem_target_bytes:
            break
        if Lt > 128:
            Lt = max(128, (Lt // 2) // 128 * 128)
        elif co_t > 8 and co_t % 8 == 0:
            co_t = max(8, (co_t // 2) // 8 * 8)
        else:
            break

    n_l = pl.cdiv(Lp, Lt)
    n_co = pl.cdiv(C_out, co_t)
    has_carry = (n_l > 1) and (K > 1)

    # --- specs ---------------------------------------------------------------
    x_spec = pl.BlockSpec((None, C_in, Lt), lambda b, c, j: (b, 0, j))
    if use_im2col:
        w_spec = pl.BlockSpec((co_t, K * C_in), lambda b, c, j: (c, 0))
    else:
        w_spec = pl.BlockSpec((K, co_t, C_in), lambda b, c, j: (0, c, 0))
    # Weight/bias block indices are constant across the inner L sweep -> revisited
    # (re-DMA'd only on a C_out-tile change), resident for the whole sweep.
    b_spec = pl.BlockSpec((co_t, 1), lambda b, c, j: (c, 0))
    out_spec = pl.BlockSpec((None, co_t, Lt), lambda b, c, j: (b, c, j))

    scratch = []
    if K > 1 and has_carry:
        scratch.append(pltpu.VMEM((C_in, K - 1), x.dtype))      # halo carry
    if K > 1 and use_im2col:
        scratch.append(pltpu.VMEM((K * C_in, Lt), x.dtype))     # im2col build

    # Honest HBM estimate: x is re-streamed n_co times (grid order (N, n_co, n_l));
    # weight is re-fetched per (batch, C_out-tile) unless it is revisited throughout.
    w_fetches = 1 if n_co == 1 else N * n_co
    cost = pl.CostEstimate(
        flops=2 * N * C_out * C_in * K * Lp,
        transcendentals=0,
        bytes_accessed=(n_co * x.size * xi + w_fetches * w_l.size * wi
                        + b_l.size * b_l.dtype.itemsize + N * C_out * Lp * oi),
    )

    kernel = functools.partial(_causal_conv1d_kernel, K=K,
                               use_im2col=use_im2col, has_carry=has_carry)

    # Halo carry makes the L axis sequential ("arbitrary"); N / C_out-tile axes stay
    # "parallel" (megacore / v7x 2-TC sharding).  Without a carry, L is parallel too.
    dims = ("parallel", "parallel", "arbitrary" if has_carry else "parallel")

    vmem_limit = int(min(max(2 * ws + (4 << 20), 32 << 20), 56 << 20))

    out = pl.pallas_call(
        kernel,
        out_shape=jax.ShapeDtypeStruct((N, C_out, Lp), out_dtype),
        grid_spec=pltpu.PrefetchScalarGridSpec(
            num_scalar_prefetch=0,
            grid=(N, n_co, n_l),
            in_specs=[x_spec, w_spec, b_spec],
            out_specs=out_spec,
            scratch_shapes=scratch,
        ),
        compiler_params=pltpu.CompilerParams(
            dimension_semantics=dims,
            vmem_limit_bytes=vmem_limit,
        ),
        cost_estimate=cost,
    )(x, w_l, b_l)

    return out[:, :, :L] if Lp != L else out


def _reference_causal_conv1d(x, weight, bias):
    """Pure-JAX reference matching PyTorch semantics (for verification)."""
    N, C_in, L = x.shape
    C_out, _, K = weight.shape
    x_pad = jnp.pad(x, ((0, 0), (0, 0), (K - 1, 0))).astype(jnp.float32)
    out = jnp.zeros((N, C_out, L), jnp.float32)
    for k in range(K):
        out = out + jnp.einsum("oc,ncl->nol",
                               weight[:, :, k].astype(jnp.float32),
                               x_pad[:, :, k:k + L],
                               precision=jax.lax.Precision.HIGHEST)
    return out + bias.astype(jnp.float32)[None, :, None]


def _make_inputs(key, N, C_in, C_out, L, K):
    kx, kw, kb = jax.random.split(key, 3)
    x = jax.random.normal(kx, (N, C_in, L), jnp.float32)
    bound = 1.0 / np.sqrt(C_in * K)
    w = jax.random.uniform(kw, (C_out, C_in, K), jnp.float32, -bound, bound)
    b = jax.random.uniform(kb, (C_out,), jnp.float32, -bound, bound)
    return x, w, b


if __name__ == "__main__":
    key = jax.random.PRNGKey(0)
    k1, k2, k3, k4 = jax.random.split(key, 4)

    # Case 1: module-scale small shapes — single (padded-to-128) L tile, no carry,
    # im2col path, n_co == 1.
    x, w, b = _make_inputs(k1, 2, 4, 8, 16, 3)
    out = jax.block_until_ready(causal_conv1d(x, w, b))
    ref = _reference_causal_conv1d(x, w, b)
    np.testing.assert_allclose(np.asarray(out), np.asarray(ref), rtol=1e-4, atol=1e-4)
    assert out.shape == (2, 8, 16)

    # Case 2: multi-tile L (VMEM halo carry), partial edge L block, C_out tiling.
    x, w, b = _make_inputs(k2, 2, 8, 16, 300, 4)
    out = jax.block_until_ready(causal_conv1d(x, w, b, l_tile=256, co_tile=8))
    ref = _reference_causal_conv1d(x, w, b)
    np.testing.assert_allclose(np.asarray(out), np.asarray(ref), rtol=1e-4, atol=1e-4)
    assert out.shape == (2, 16, 300)

    # Case 3: force the large-C_in K-accumulating-dot path (no im2col), with carry.
    x, w, b = _make_inputs(k3, 1, 8, 8, 200, 3)
    out = jax.block_until_ready(
        causal_conv1d(x, w, b, l_tile=128, cin_kdot_threshold=1))
    ref = _reference_causal_conv1d(x, w, b)
    np.testing.assert_allclose(np.asarray(out), np.asarray(ref), rtol=1e-4, atol=1e-4)
    assert out.shape == (1, 8, 200)

    # Case 4: K == 1 (pointwise) path, no scratch.
    x, w, b = _make_inputs(k4, 2, 4, 4, 16, 1)
    out = jax.block_until_ready(causal_conv1d(x, w, b))
    ref = _reference_causal_conv1d(x, w, b)
    np.testing.assert_allclose(np.asarray(out), np.asarray(ref), rtol=1e-4, atol=1e-4)

    # Case 5: bf16 compute dtype (v6e/v7x HBM-saving mode), f32 accumulation.
    x, w, b = _make_inputs(k1, 2, 4, 8, 16, 3)
    out = jax.block_until_ready(causal_conv1d(x, w, b, compute_dtype=jnp.bfloat16))
    ref = _reference_causal_conv1d(x, w, b)
    np.testing.assert_allclose(np.asarray(out), np.asarray(ref), rtol=5e-2, atol=5e-2)

    print("KERNEL_OK")
</pallas_src>

<mosaic_0001>
module attributes {stable_mosaic.version = 11 : i64} {
  func.func @_causal_conv1d_kernel(%arg0: i32, %arg1: i32, %arg2: i32, %arg3: memref<1x4x128xf32, #tpu.memory_space<vmem>>, %arg4: memref<8x12xf32, #tpu.memory_space<vmem>>, %arg5: memref<8x1xf32, #tpu.memory_space<vmem>>, %arg6: memref<1x8x128xf32, #tpu.memory_space<vmem>>, %arg7: memref<12x128xf32, #tpu.memory_space<vmem>>) attributes {dimension_semantics = [#tpu.dimension_semantics<parallel>, #tpu.dimension_semantics<parallel>, #tpu.dimension_semantics<parallel>], iteration_bounds = array<i64: 2, 1, 1>, scalar_prefetch = 0 : i64, scratch_operands = 1 : i64, tpu.core_type = #tpu.core_type<tc>, window_params = [{transform_indices = @transform_0, window_bounds = array<i64: 1, 4, 128>}, {transform_indices = @transform_1, window_bounds = array<i64: 8, 12>}, {transform_indices = @transform_2, window_bounds = array<i64: 8, 1>}, {transform_indices = @transform_3, window_bounds = array<i64: 1, 8, 128>}]} {
    %c0 = arith.constant 0 : index
    %c0_0 = arith.constant 0 : index
    %c0_1 = arith.constant 0 : index
    %0 = vector.load %arg3[%c0, %c0_0, %c0_1] : memref<1x4x128xf32, #tpu.memory_space<vmem>>, vector<1x4x128xf32>
    %1 = vector.shape_cast %0 : vector<1x4x128xf32> to vector<4x128xf32>
    %cst = arith.constant 0.000000e+00 : f32
    %2 = vector.broadcast %cst : f32 to vector<4x2xf32>
    %3 = vector.extract_strided_slice %1 {offsets = [0, 0], sizes = [4, 126], strides = [1, 1]} : vector<4x128xf32> to vector<4x126xf32>
    %4 = tpu.concatenate %2, %3 in 1 : vector<4x2xf32>, vector<4x126xf32> -> vector<4x128xf32>
    %c0_2 = arith.constant 0 : index
    %c0_3 = arith.constant 0 : index
    %5 = vector.load %arg7[%c0_2, %c0_3] : memref<12x128xf32, #tpu.memory_space<vmem>>, vector<4x128xf32>
    tpu.vector_store %arg7[%c0_2, %c0_3], %4 {strides = array<i32>} : memref<12x128xf32, #tpu.memory_space<vmem>>, vector<4x128xf32>,
    %6 = vector.extract_strided_slice %2 {offsets = [0, 1], sizes = [4, 1], strides = [1, 1]} : vector<4x2xf32> to vector<4x1xf32>
    %7 = vector.extract_strided_slice %1 {offsets = [0, 0], sizes = [4, 127], strides = [1, 1]} : vector<4x128xf32> to vector<4x127xf32>
    %8 = tpu.concatenate %6, %7 in 1 : vector<4x1xf32>, vector<4x127xf32> -> vector<4x128xf32>
    %c4 = arith.constant 4 : index
    %c0_4 = arith.constant 0 : index
    %9 = vector.load %arg7[%c4, %c0_4] : memref<12x128xf32, #tpu.memory_space<vmem>>, vector<4x128xf32>
    tpu.vector_store %arg7[%c4, %c0_4], %8 {strides = array<i32>} : memref<12x128xf32, #tpu.memory_space<vmem>>, vector<4x128xf32>,
    %c8 = arith.constant 8 : index
    %c0_5 = arith.constant 0 : index
    %10 = vector.load %arg7[%c8, %c0_5] : memref<12x128xf32, #tpu.memory_space<vmem>>, vector<4x128xf32>
    tpu.vector_store %arg7[%c8, %c0_5], %1 {strides = array<i32>} : memref<12x128xf32, #tpu.memory_space<vmem>>, vector<4x128xf32>,
    %c0_6 = arith.constant 0 : index
    %c0_7 = arith.constant 0 : index
    %11 = vector.load %arg4[%c0_6, %c0_7] : memref<8x12xf32, #tpu.memory_space<vmem>>, vector<8x12xf32>
    %c0_8 = arith.constant 0 : index
    %c0_9 = arith.constant 0 : index
    %12 = vector.load %arg7[%c0_8, %c0_9] : memref<12x128xf32, #tpu.memory_space<vmem>>, vector<12x128xf32>
    %cst_10 = arith.constant dense<0.000000e+00> : vector<8x128xf32>
    %13 = tpu.matmul %11, %12, %cst_10 {dimension_numbers = #tpu.dot_dimension_numbers<[1], [0], [0], [1], [0, 0, 1, 1], [], []>} : vector<8x12xf32>, vector<12x128xf32>, vector<8x128xf32> -> vector<8x128xf32>
    %c0_11 = arith.constant 0 : index
    %c0_12 = arith.constant 0 : index
    %14 = vector.load %arg5[%c0_11, %c0_12] : memref<8x1xf32, #tpu.memory_space<vmem>>, vector<8x1xf32>
    %15 = vector.broadcast %14 : vector<8x1xf32> to vector<8x128xf32>
    %16 = arith.addf %13, %15 : vector<8x128xf32>
    %c0_13 = arith.constant 0 : index
    %c0_14 = arith.constant 0 : index
    %c0_15 = arith.constant 0 : index
    %17 = vector.load %arg6[%c0_13, %c0_14, %c0_15] : memref<1x8x128xf32, #tpu.memory_space<vmem>>, vector<1x8x128xf32>
    %18 = vector.shape_cast %17 : vector<1x8x128xf32> to vector<8x128xf32>
    %19 = vector.shape_cast %16 : vector<8x128xf32> to vector<1x8x128xf32>
    tpu.vector_store %arg6[%c0_13, %c0_14, %c0_15], %19 {strides = array<i32>} : memref<1x8x128xf32, #tpu.memory_space<vmem>>, vector<1x8x128xf32>,
    return
  }
  func.func @transform_0(%arg0: i32, %arg1: i32, %arg2: i32) -> (i32, i32, i32) {
    %c0_i32 = arith.constant 0 : i32
    %c0_i32_0 = arith.constant 0 : i32
    return %arg0, %c0_i32, %arg2 : i32, i32, i32
  }
  func.func @transform_1(%arg0: i32, %arg1: i32, %arg2: i32) -> (i32, i32) {
    %c0_i32 = arith.constant 0 : i32
    %c0_i32_0 = arith.constant 0 : i32
    return %arg1, %c0_i32 : i32, i32
  }
  func.func @transform_2(%arg0: i32, %arg1: i32, %arg2: i32) -> (i32, i32) {
    %c0_i32 = arith.constant 0 : i32
    %c0_i32_0 = arith.constant 0 : i32
    return %arg1, %c0_i32 : i32, i32
  }
  func.func @transform_3(%arg0: i32, %arg1: i32, %arg2: i32) -> (i32, i32, i32) {
    %c0_i32 = arith.constant 0 : i32
    return %arg0, %arg1, %arg2 : i32, i32, i32
  }
}

</mosaic_0001>

<llo_original>
// kernel: tpu_custom_call.1
$region0: #{tpu_custom_call.1}
  #allocation0 [shape = 'u32[]', space=smem, size = 0x4, offset = 0x4, fixed_abs, tag = 'smem constant byte address 0x4 - core index']
  #allocation1 [shape = 'u32[144,128]{1,0:T(1,128)}', space=vmem, size = 0x12000, scoped, tag = 'internal scratch']
  #allocation2 [shape = 'f32[12,128]{1,0:T(8,128)}', space=vmem, size = 0x2000, scoped, tag = 'scratch operand']
  %s0 = inlined_call_operand.vmem [shape: f32[2,4,128], index: 0, kind: input, shape index: {}]
  %s1 = inlined_call_operand.hbm [shape: f32[8,12], index: 1, kind: input, shape index: {}]
  %s2 = inlined_call_operand.vmem [shape: f32[8,1], index: 2, kind: input, shape index: {}]
  %s3 = inlined_call_operand.hbm [shape: f32[2,8,128], index: 3, kind: output, shape index: {}]
  %s4 = sld [smem:[#allocation0]]
  $region49: #{tpu_custom_call.1} parent=0
    _
  %s6 = ssub.s32 1, %s4
  %s7 = scalar_select 0, %s6, %s4
  $region1: #{tpu_custom_call.1} parent=0
    #allocation3 [shape = 'u8[4096]{0}', space=vmem, size = 0x1000, scoped, tag = 'input window, operand 1, single buffered']
    #allocation4 [shape = 's32[2]{0}', space=sflag, size = 0x8, scoped, tag = 'scoped memory for tpu_custom_call.1']
    #allocation5 [shape = 's32[2]{0}', space=sflag, size = 0x8, scoped, tag = 'scoped memory for tpu_custom_call.1']
    #allocation6 [shape = 'u8[8192]{0}', space=vmem, size = 0x2000, scoped, tag = 'output window, operand 0']
    %8 = vsyncpa [#allocation4], 0
    %9 = vsyncpa [#allocation5], 0
    %s10 = scalar_lea.sflag [#allocation5], 1
    %11 = vsyncpa %s10, 0
    loop: start=0, step=1, limit=4
    $region2: #{tpu_custom_call.1} parent=1 // loop_pre_header
      _
    $region3: #{tpu_custom_call.1} parent=1 // loop_header
      %s13 = sphi 0, %s17
      %p14 = scmp.ge.s32.totalorder %s13, 4
      %s20 = sphi 0, %s39
      %s21 = sphi 0, %s35
      %s22 = sphi 0, %s31
      %s23 = sphi 0, %s20
      %s24 = sphi 0, %s21
      %s25 = sphi 0, %s22
      %s26 = sphi 0, %s23
      %s27 = sphi 0, %s24
      %s28 = sphi 0, %s25
      %s44 = sphi 0, %s46
      %s47 = sphi 0, %s44
      %s48 = sphi 0, %s47
      %s64 = sphi 0, %s48
      %s70 = sphi 0, %s72
      %s73 = sphi 0, %s70
      %s74 = sphi 0, %s73
      %s90 = sphi 0, %s74
      %s96 = sphi 0, %s98
      %s99 = sphi 0, %s96
      %s100 = sphi 0, %s99
      %s116 = sphi 0, %s100
      %s126 = sphi 0, %s128
      %s129 = sphi 0, %s126
      %s130 = sphi 0, %s129
      %s146 = sphi 0, %s130
    $region4: #{tpu_custom_call.1} parent=1 // loop_header_branch
      %16 = sbr.rel (%p14) target = $region8
    $region5: #{tpu_custom_call.1} parent=1 // loop_body
      %s18 = ssub.s32 %s13, 1
      %s19 = ssub.s32 %s13, 2
      %s29 = sadd.s32 1, %s22
      %p30 = scmp.ge.s32.totalorder %s29, 1
      %s31 = scalar_select %p30, 0, %s29
      %s32 = sadd.s32 1, %s21
      %s33 = scalar_select %p30, %s32, %s21
      %p34 = scmp.ge.s32.totalorder %s33, 1
      %s35 = scalar_select %p34, 0, %s33
      %s36 = sadd.s32 1, %s20
      %s37 = scalar_select %p34, %s36, %s20
      %p38 = scmp.ge.s32.totalorder %s37, 2
      %s39 = scalar_select %p38, 0, %s37
      %s40 = ssub.s32 %s20, %s39
      %s41 = ssub.s32 %s22, %s31
      %s42 = sor.u32 %s40, %s41
      %p43 = scmp.eq.s32.totalorder %s42, 0
      %s45 = sadd.s32 %s44, 1
      %s46 = scalar_select %p43, %s44, %s45
      %p49 = pneg %p43
      %p50 = scmp.eq.s32.totalorder %s13, 1
      %p51 = por %p49, %p50
      %p52 = scmp.ne.s32.totalorder %s44, %s47
      %p53 = scmp.eq.s32.totalorder %s13, 0
      %p54 = por %p52, %p53
      %p55 = scmp.ne.s32.totalorder %s44, %s47
      %p56 = scmp.eq.s32.totalorder %s18, 1
      %p57 = por %p55, %p56
      %p58 = scmp.ne.s32.totalorder %s47, %s48
      %p59 = scmp.eq.s32.totalorder %s18, 0
      %p60 = por %p58, %p59
      %p61 = scmp.ne.s32.totalorder %s47, %s48
      %p62 = scmp.eq.s32.totalorder %s19, 1
      %p63 = por %p61, %p62
      %p65 = scmp.ne.s32.totalorder %s48, %s64
      %p66 = scmp.eq.s32.totalorder %s19, 0
      %p67 = por %p65, %p66
      %s68 = ssub.s32 %s21, %s35
      %p69 = scmp.eq.s32.totalorder %s68, 0
      %s71 = sadd.s32 %s70, 1
      %s72 = scalar_select %p69, %s70, %s71
      %p75 = pneg %p69
      %p76 = scmp.eq.s32.totalorder %s13, 1
      %p77 = por %p75, %p76
      %p78 = scmp.ne.s32.totalorder %s70, %s73
      %p79 = scmp.eq.s32.totalorder %s13, 0
      %p80 = por %p78, %p79
      %p81 = scmp.ne.s32.totalorder %s70, %s73
      %p82 = scmp.eq.s32.totalorder %s18, 1
      %p83 = por %p81, %p82
      %p84 = scmp.ne.s32.totalorder %s73, %s74
      %p85 = scmp.eq.s32.totalorder %s18, 0
      %p86 = por %p84, %p85
      %p87 = scmp.ne.s32.totalorder %s73, %s74
      %p88 = scmp.eq.s32.totalorder %s19, 1
      %p89 = por %p87, %p88
      %p91 = scmp.ne.s32.totalorder %s74, %s90
      %p92 = scmp.eq.s32.totalorder %s19, 0
      %p93 = por %p91, %p92
      %s94 = ssub.s32 %s21, %s35
      %p95 = scmp.eq.s32.totalorder %s94, 0
      %s97 = sadd.s32 %s96, 1
      %s98 = scalar_select %p95, %s96, %s97
      %p101 = pneg %p95
      %p102 = scmp.eq.s32.totalorder %s13, 1
      %p103 = por %p101, %p102
      %p104 = scmp.ne.s32.totalorder %s96, %s99
      %p105 = scmp.eq.s32.totalorder %s13, 0
      %p106 = por %p104, %p105
      %p107 = scmp.ne.s32.totalorder %s96, %s99
      %p108 = scmp.eq.s32.totalorder %s18, 1
      %p109 = por %p107, %p108
      %p110 = scmp.ne.s32.totalorder %s99, %s100
      %p111 = scmp.eq.s32.totalorder %s18, 0
      %p112 = por %p110, %p111
      %p113 = scmp.ne.s32.totalorder %s99, %s100
      %p114 = scmp.eq.s32.totalorder %s19, 1
      %p115 = por %p113, %p114
      %p117 = scmp.ne.s32.totalorder %s100, %s116
      %p118 = scmp.eq.s32.totalorder %s19, 0
      %p119 = por %p117, %p118
      %s120 = ssub.s32 %s20, %s39
      %s121 = ssub.s32 %s21, %s35
      %s122 = sor.u32 %s120, %s121
      %s123 = ssub.s32 %s22, %s31
      %s124 = sor.u32 %s122, %s123
      %p125 = scmp.eq.s32.totalorder %s124, 0
      %s127 = sadd.s32 %s126, 1
      %s128 = scalar_select %p125, %s126, %s127
      %p131 = pneg %p125
      %p132 = scmp.eq.s32.totalorder %s13, 1
      %p133 = por %p131, %p132
      %p134 = scmp.ne.s32.totalorder %s126, %s129
      %p135 = scmp.eq.s32.totalorder %s13, 0
      %p136 = por %p134, %p135
      %p137 = scmp.ne.s32.totalorder %s126, %s129
      %p138 = scmp.eq.s32.totalorder %s18, 1
      %p139 = por %p137, %p138
      %p140 = scmp.ne.s32.totalorder %s129, %s130
      %p141 = scmp.eq.s32.totalorder %s18, 0
      %p142 = por %p140, %p141
      %p143 = scmp.ne.s32.totalorder %s129, %s130
      %p144 = scmp.eq.s32.totalorder %s19, 1
      %p145 = por %p143, %p144
      %p147 = scmp.ne.s32.totalorder %s130, %s146
      %p148 = scmp.eq.s32.totalorder %s19, 0
      %p149 = por %p147, %p148
      %p150 = scmp.le.s32.totalorder 1, %s13
      %p151 = scmp.lt.s32.totalorder %s13, 3
      %p152 = pnand %p150, %p151
      %p153 = pneg %p152
      // Predicated region
      $region9: #{tpu_custom_call.1} parent=5 // pred_check
        _
      $region10: #{tpu_custom_call.1} parent=5 // pred_check_branch
        %155 = sbr.rel (%p152) target = $region12
      $region11: #{tpu_custom_call.1} parent=5 // pred_region
        %s156 = ssub.s32 %s13, 1
        // Predicated region
        $region13: #{tpu_custom_call.1} parent=11 // pred_check
          %p157 = pneg %p86
        $region14: #{tpu_custom_call.1} parent=11 // pred_check_branch
          %159 = sbr.rel (%p157) target = $region16
        $region15: #{tpu_custom_call.1} parent=11 // pred_region
          %s161 = ssub.s32 128, 128
          %162 = vsyncadd [#allocation4], %s161
          %s163 = smul.addr %s24, 128
          %s164 = scalar_lea.hbm %s1, %s163
          %s166 = sshll.u32 [#allocation3], 4
          %s167 = int_to_ptr.vmem [resolvable:$true] %s166
          %169 = dma.hbm_to_vmem [thread:$0]  %s164, 128, %s167, [#allocation4]
        $region16: #{tpu_custom_call.1} parent=11 // pred_fallthru
          _
        // Predicated region
        $region17: #{tpu_custom_call.1} parent=11 // pred_check
          %p170 = pneg %p112
        $region18: #{tpu_custom_call.1} parent=11 // pred_check_branch
          %172 = sbr.rel (%p170) target = $region20
        $region19: #{tpu_custom_call.1} parent=11 // pred_region
          %p173 = scmp.lt.s32.totalorder %s24, 0
          %s174 = scalar_select %p173, %s24, 0
          %s175 = smul.addr %s174, 8
          %s176 = scalar_lea.vmem %s2, %s175
        $region20: #{tpu_custom_call.1} parent=11 // pred_fallthru
          _
      $region12: #{tpu_custom_call.1} parent=5 // pred_fallthru
        _
      %p177 = scmp.lt.s32.totalorder %s13, 2
      // Predicated region
      $region21: #{tpu_custom_call.1} parent=5 // pred_check
        %p178 = pneg %p177
      $region22: #{tpu_custom_call.1} parent=5 // pred_check_branch
        %180 = sbr.rel (%p178) target = $region24
      $region23: #{tpu_custom_call.1} parent=5 // pred_region
        // Predicated region
        $region25: #{tpu_custom_call.1} parent=23 // pred_check
          %p181 = pneg %p54
        $region26: #{tpu_custom_call.1} parent=23 // pred_check_branch
          %183 = sbr.rel (%p181) target = $region28
        $region27: #{tpu_custom_call.1} parent=23 // pred_region
          %p184 = scmp.lt.s32.totalorder %s20, 1
          %s185 = scalar_select %p184, %s20, 1
          %p186 = scmp.lt.s32.totalorder %s22, 0
          %s187 = scalar_select %p186, %s22, 0
          %s188 = sadd.s32 %s187, %s185
          %s189 = smul.addr %s188, 4
          %s190 = scalar_lea.vmem %s0, %s189
        $region28: #{tpu_custom_call.1} parent=23 // pred_fallthru
          _
      $region24: #{tpu_custom_call.1} parent=5 // pred_fallthru
        _
      %p191 = scmp.le.s32.totalorder 1, %s13
      %p192 = scmp.lt.s32.totalorder %s13, 3
      %p193 = pnand %p191, %p192
      %p194 = pneg %p193
      // Predicated region
      $region29: #{tpu_custom_call.1} parent=5 // pred_check
        _
      $region30: #{tpu_custom_call.1} parent=5 // pred_check_branch
        %196 = sbr.rel (%p193) target = $region32
      $region31: #{tpu_custom_call.1} parent=5 // pred_region
        %s197 = ssub.s32 %s13, 1
        // Predicated region
        $region33: #{tpu_custom_call.1} parent=31 // pred_check
          %p198 = pneg %p86
        $region34: #{tpu_custom_call.1} parent=31 // pred_check_branch
          %200 = sbr.rel (%p198) target = $region36
        $region35: #{tpu_custom_call.1} parent=31 // pred_region
          %201 = dma.done [#allocation4], 128
        $region36: #{tpu_custom_call.1} parent=31 // pred_fallthru
          _
        %p202 = scmp.lt.s32.totalorder %s23, 1
        %s203 = scalar_select %p202, %s23, 1
        %p204 = scmp.lt.s32.totalorder %s25, 0
        %s205 = scalar_select %p204, %s25, 0
        %s206 = sadd.s32 %s205, %s203
        %s207 = smul.addr %s206, 4
        %s208 = scalar_lea.vmem %s0, %s207
        %p209 = pneg %p60
        %p210 = pneg %p57
        %p211 = pneg %p86
        %p212 = pneg %p83
        %p213 = scmp.lt.s32.totalorder %s24, 0
        %s214 = scalar_select %p213, %s24, 0
        %s215 = smul.addr %s214, 8
        %s216 = scalar_lea.vmem %s2, %s215
        %p217 = pneg %p112
        %p218 = pneg %p109
        %p219 = pneg %p142
        %p220 = pneg %p139
        %s221 = sand.u32 %s129, 1
        %s222 = scalar_lea.sflag [#allocation5], %s221
        %s223 = sand.u32 %s129, 1
        %s224 = smul.addr %s223, 8
        %s225 = scalar_lea.vmem [#allocation6], %s224
        %p226 = scmp.lt.s32.totalorder %s23, 1
        %s227 = scalar_select %p226, %s23, 1
        %p228 = scmp.lt.s32.totalorder %s25, 0
        %s229 = scalar_select %p228, %s25, 0
        %s230 = sadd.s32 %s229, %s227
        %s231 = smul.addr %s230, 4
        %s232 = scalar_lea.vmem %s0, %s231
        %p233 = scmp.lt.s32.totalorder %s24, 0
        %s234 = scalar_select %p233, %s24, 0
        %s235 = smul.addr %s234, 8
        %s236 = scalar_lea.vmem %s2, %s235
        %v237 = vld [vmem:[%s232] sm:$0xf]
        %239 = vrot.lane.b32.xlu0 %v237, 2
        %v240 = vpop.permute.xlu0 %239
        %vm242 = vcmask 15360
        %v243 = vsel %vm242, 0.0, %v240
        %244 = vst [vmem:[#allocation2] sm:$0xf] %v243
        %245 = vrot.lane.b32.xlu0 %v237, 1
        %v246 = vpop.permute.xlu0 %245
        %vm248 = vcmask 7168
        %v249 = vsel %vm248, 0.0, %v246
        %250 = vst [vmem:[#allocation2 + $0x4] sm:$0xf] %v249
        %251 = vst [vmem:[#allocation2 + $0x8] sm:$0xf] %v237
        %v252 = vld [vmem:[#allocation3] sm:$0xff]
        %v253 = vld [vmem:[#allocation2] sm:$0xff]
        %v254 = vld [vmem:[#allocation2 + $0x8] sm:$0xf]
        %v255 = vld [vmem:[%s236] sm:$0xff]
        %257 = vset.pattern.permute.xlu0 0
        %258 = vperm.xlu0 %257, %v255
        %v259 = vpop.permute.xlu0 %258
        %vm261 = vcmask 97280
        %v263 = vsel %vm261, %v252, 0
        %vm265 = vcmask 1043456
        %v267 = vsel %vm265, %v254, 0
        %269 = vmatprep.subr.mxu0 0.0
        %270 = vmatpush1.msra.mxu0 0.0
        %271 = vmatprep.subr.mxu0 0.0
        %272 = vmatpush1.msra.mxu0 0.0
        %273 = vmatprep.subr.mxu0 0.0
        %274 = vmatpush1.msra.mxu0 0.0
        %275 = vmatprep.subr.mxu0 0.0
        %276 = vmatpush1.msra.mxu0 0.0
        %277 = vmatprep.subr.mxu0 0.0
        %278 = vmatpush1.msra.mxu0 0.0
        %279 = vmatprep.subr.mxu0 0.0
        %280 = vmatpush1.msra.mxu0 0.0
        %281 = vmatprep.subr.mxu0 0.0
        %282 = vmatpush1.msra.mxu0 0.0
        %283 = vmatprep.subr.mxu0 0.0
        %284 = vmatpush1.msra.mxu0 0.0
        %285 = vmatprep.subr.mxu0 0.0
        %286 = vmatpush1.msra.mxu0 0.0
        %287 = vmatprep.subr.mxu0 0.0
        %288 = vmatpush1.msra.mxu0 0.0
        %289 = vmatprep.subr.mxu0 0.0
        %290 = vmatpush1.msra.mxu0 0.0
        %291 = vmatprep.subr.mxu0 0.0
        %292 = vmatpush1.msra.mxu0 0.0
        %293 = vmatprep.subr.mxu0 0.0
        %294 = vmatpush1.msra.mxu0 0.0
        %295 = vmatprep.subr.mxu0 0.0
        %296 = vmatpush1.msra.mxu0 0.0
        %297 = vmatprep.subr.mxu0 0.0
        %298 = vmatpush1.msra.mxu0 %v267
        %299 = vmatprep.subr.mxu0 0.0
        %300 = vmatpush1.msra.mxu0 %v253
        %301 = vmatprep.subr.mxu0 0.0
        %302 = vmatpush2.msra.mxu0 0.0
        %303 = vmatprep.subr.mxu0 0.0
        %304 = vmatpush2.msra.mxu0 0.0
        %305 = vmatprep.subr.mxu0 0.0
        %306 = vmatpush2.msra.mxu0 0.0
        %307 = vmatprep.subr.mxu0 0.0
        %308 = vmatpush2.msra.mxu0 0.0
        %309 = vmatprep.subr.mxu0 0.0
        %310 = vmatpush2.msra.mxu0 0.0
        %311 = vmatprep.subr.mxu0 0.0
        %312 = vmatpush2.msra.mxu0 0.0
        %313 = vmatprep.subr.mxu0 0.0
        %314 = vmatpush2.msra.mxu0 0.0
        %315 = vmatprep.subr.mxu0 0.0
        %316 = vmatpush2.msra.mxu0 0.0
        %317 = vmatprep.subr.mxu0 0.0
        %318 = vmatpush2.msra.mxu0 0.0
        %319 = vmatprep.subr.mxu0 0.0
        %320 = vmatpush2.msra.mxu0 0.0
        %321 = vmatprep.subr.mxu0 0.0
        %322 = vmatpush2.msra.mxu0 0.0
        %323 = vmatprep.subr.mxu0 0.0
        %324 = vmatpush2.msra.mxu0 0.0
        %325 = vmatprep.subr.mxu0 0.0
        %326 = vmatpush2.msra.mxu0 0.0
        %327 = vmatprep.subr.mxu0 0.0
        %328 = vmatpush2.msra.mxu0 0.0
        %329 = vmatprep.subr.mxu0 0.0
        %330 = vmatpush2.msra.mxu0 0.0
        %331 = vmatprep.subr.mxu0 0.0
        %332 = vmatpush2.msra.mxu0 0.0
        %333 = vmatprep.mubr.f32.mxu0 0.0
        %334 = vmatmul.mubr.f32.gmra.mxu0 %v263
        %v335 = vpop.f32.mrf.mxu0
        %v336 = vadd.f32 %v259, %v335
        %v337 = vpop.f32.mrf.mxu0
        %338 = vdwg.mxu0
        %339 = vst [vmem:[%s225] sm:$0xff] %v336
        %s340 = sand.u32 %s129, 1
        %s341 = scalar_lea.sflag [#allocation5], %s340
        %s342 = sand.u32 %s129, 1
        %s343 = smul.addr %s342, 8
        %s344 = scalar_lea.vmem [#allocation6], %s343
        // Predicated region
        $region37: #{tpu_custom_call.1} parent=31 // pred_check
          %p345 = pneg %p139
        $region38: #{tpu_custom_call.1} parent=31 // pred_check_branch
          %347 = sbr.rel (%p345) target = $region40
        $region39: #{tpu_custom_call.1} parent=31 // pred_region
          %s349 = ssub.s32 128, 128
          %350 = vsyncadd %s341, %s349
          %s351 = sadd.s32 %s25, %s24
          %s352 = sadd.s32 %s351, %s23
          %s353 = smul.addr %s352, 128
          %s354 = scalar_lea.hbm %s3, %s353
          %s356 = sshll.u32 %s344, 4
          %s357 = int_to_ptr.vmem [resolvable:$true] %s356
          %359 = dma.vmem_to_hbm [thread:$0]  %s357, 128, %s354, %s341
        $region40: #{tpu_custom_call.1} parent=31 // pred_fallthru
          _
      $region32: #{tpu_custom_call.1} parent=5 // pred_fallthru
        _
      %p360 = scmp.le.s32.totalorder 2, %s13
      // Predicated region
      $region41: #{tpu_custom_call.1} parent=5 // pred_check
        %p361 = pneg %p360
      $region42: #{tpu_custom_call.1} parent=5 // pred_check_branch
        %363 = sbr.rel (%p361) target = $region44
      $region43: #{tpu_custom_call.1} parent=5 // pred_region
        %s364 = ssub.s32 %s13, 2
        // Predicated region
        $region45: #{tpu_custom_call.1} parent=43 // pred_check
          %p365 = pneg %p145
        $region46: #{tpu_custom_call.1} parent=43 // pred_check_branch
          %367 = sbr.rel (%p365) target = $region48
        $region47: #{tpu_custom_call.1} parent=43 // pred_region
          %s368 = sand.u32 %s130, 1
          %s369 = scalar_lea.sflag [#allocation5], %s368
          %s370 = sand.u32 %s130, 1
          %s371 = smul.addr %s370, 8
          %s372 = scalar_lea.vmem [#allocation6], %s371
          %373 = dma.done %s369, 128
        $region48: #{tpu_custom_call.1} parent=43 // pred_fallthru
          _
      $region44: #{tpu_custom_call.1} parent=5 // pred_fallthru
        _
    $region6: #{tpu_custom_call.1} parent=1 // loop_footer
      %s17 = sadd.s32 1, %s13
    $region7: #{tpu_custom_call.1} parent=1 // loop_footer_branch
      %12 = sbr.rel target = $region3
    $region8: #{tpu_custom_call.1} parent=1 // loop_exit
      _
    %374 = vsyncpa [#allocation4], 1
    %s375 = scalar_lea.sflag [#allocation4], 1
    %376 = vsyncpa %s375, 1
    %377 = vsyncpa [#allocation5], 1
    %s378 = scalar_lea.sflag [#allocation5], 1
    %379 = vsyncpa %s378, 1

</llo_original>
